<compile_context>
chip_gen: v7x
topology: tpu7x:2x2x1
jax: 0.10.0
libtpu: 0.0.40
codegen_flags: <defaults>
</compile_context>

<pallas_src>
import functools

import jax
import jax.numpy as jnp
from jax import lax
from jax.experimental import pallas as pl
from jax.experimental.pallas import tpu as pltpu

EPS = 1e-3  # BatchNorm eps used by the module


# ---------------------------------------------------------------------------
# In-kernel helper: stack the shifted halo slabs along the contraction axis
# ---------------------------------------------------------------------------
def _stack_x(xw_ref, *, n_off, tile):
    """xw_ref block: (1, 1, inc, tile + n_off - 1) bf16.
    Returns ((n_off)*inc, tile): row block o holds x shifted by (o - maxd)."""
    xw = xw_ref[0, 0]                                   # (inc, win)
    parts = [xw[:, o:o + tile] for o in range(n_off)]
    return jnp.concatenate(parts, axis=0)               # (n_off*inc, tile)


# ---------------------------------------------------------------------------
# Fused stats pass (old pass A + pass B):  per-batch augmented Gram of Y
# ---------------------------------------------------------------------------
def _stats_kernel(xw_ref, w_ref, g_ref, *, n_off, tile, bd, rows, l_true,
                  need_mask):
    lt = pl.program_id(1)

    @pl.when(lt == 0)
    def _init():
        g_ref[...] = jnp.zeros_like(g_ref)

    xstk = _stack_x(xw_ref, n_off=n_off, tile=tile)      # ((n_off)*inc, tile)
    # One MXU matmul: every branch/tap is a block of w_ref -> Y (rows, tile).
    y = jnp.dot(w_ref[...], xstk, preferred_element_type=jnp.float32)

    if need_mask:                                        # static Python bool
        col = lt * tile + lax.broadcasted_iota(jnp.int32, (1, tile), 1)
        valid = (col < l_true).astype(jnp.float32)       # (1, tile)
        y = y * valid                                    # zero padded columns
    else:
        valid = jnp.ones((1, tile), jnp.float32)

    # Inject the "ones/valid" row at index bd (row bd of w_ref is all-zero),
    # so the single Gram also carries row-sums and the valid-column count.
    row_id = lax.broadcasted_iota(jnp.int32, (rows, tile), 0)
    yaug = jnp.where(row_id == bd, valid, y)             # (rows, tile)

    g_ref[0] += lax.dot_general(yaug, yaug, (((1,), (1,)), ((), ())),
                                preferred_element_type=jnp.float32)


# ---------------------------------------------------------------------------
# Apply pass: fully folded conv (one matmul) + SE mask + PReLU, lane-dense out
# ---------------------------------------------------------------------------
def _apply_kernel(xw_ref, w_ref, b_ref, m_ref, a_ref, o_ref, *, n_off, tile):
    xstk = _stack_x(xw_ref, n_off=n_off, tile=tile)
    o = jnp.dot(w_ref[...], xstk, preferred_element_type=jnp.float32)
    o = (o + b_ref[...]) * m_ref[0]          # bias + per-batch SE mask (depth,1)
    a = a_ref[0]                             # PReLU slope (SMEM scalar)
    o_ref[0] = jnp.where(o >= 0.0, o, a * o).astype(o_ref.dtype)


# ---------------------------------------------------------------------------
# Wrapper
# ---------------------------------------------------------------------------
def _pick_tile(L, rows):
    """Largest lane-dense tile whose (rows, tile) f32 temporaries stay small."""
    max_t = 128
    for t in (128, 256, 512, 1024, 2048, 4096):
        if rows * t * 4 <= 6 * 1024 * 1024:
            max_t = t
    for t in (4096, 2048, 1024, 512, 256, 128):
        if t <= max_t and L % t == 0:
            return t
    # non-divisible L: cdiv grid + masked tail (never a huge single block)
    return min(max_t, 512) if L > 2048 else 128


def multi_aspp_block(x, params, *, out_dtype=jnp.float32):
    """x: (B, inc, L) NCL (PyTorch convention). Returns (B, depth, L)."""
    B, inc, L = x.shape
    wconv = params["wconv"]                              # (branchs, depth, inc, 3)
    branchs, depth = int(wconv.shape[0]), int(wconv.shape[1])
    maxd = branchs                                       # largest dilation
    n_off = 2 * maxd + 1
    bd = branchs * depth
    rows = ((bd + 1 + 7) // 8) * 8                       # Gram rows (sublane mult)
    n_cols = B * L
    hi = lax.Precision.HIGHEST                           # tiny wrapper folds only

    tile = _pick_tile(L, rows)
    n_lt = (L + tile - 1) // tile
    Lp = n_lt * tile
    need_mask = Lp != L
    win = tile + 2 * maxd

    # x as per-tile bf16 halo windows: built once, reused by BOTH passes.
    xpad = jnp.pad(x, ((0, 0), (0, 0), (maxd, maxd + Lp - L)))
    xwin = jnp.stack([xpad[:, :, i * tile:i * tile + win] for i in range(n_lt)],
                     axis=1).astype(jnp.bfloat16)        # (B, n_lt, inc, win)
    x_spec = pl.BlockSpec((1, 1, inc, win), lambda b, t: (b, t, 0, 0))

    # One (rows, n_off*inc) conv weight: branch br, tap k lives at column block
    # o = maxd + (k-1)*(br+1); rows >= bd are zero (row bd is the "ones" slot).
    wconv_f = wconv.astype(jnp.float32)
    w_all = jnp.zeros((rows, n_off * inc), jnp.float32)
    for br in range(branchs):
        d = br + 1
        for k in range(3):
            o = maxd + (k - 1) * d
            w_all = w_all.at[br * depth:(br + 1) * depth,
                             o * inc:(o + 1) * inc].set(wconv_f[br, :, :, k])
    w_all_bf = w_all.astype(jnp.bfloat16)
    w_all_q = w_all_bf.astype(jnp.float32)[:bd]          # what the stats pass saw

    vmem = 32 * 1024 * 1024                              # v7x-safe scoped limit
    cp_stats = pltpu.CompilerParams(
        dimension_semantics=("parallel", "arbitrary"), vmem_limit_bytes=vmem)
    cp_apply = pltpu.CompilerParams(
        dimension_semantics=("parallel", "parallel"), vmem_limit_bytes=vmem)

    # ---------------- fused stats pass ------------------------------------
    g = pl.pallas_call(
        functools.partial(_stats_kernel, n_off=n_off, tile=tile, bd=bd,
                          rows=rows, l_true=L, need_mask=need_mask),
        grid=(B, n_lt),
        in_specs=[x_spec,
                  pl.BlockSpec((rows, n_off * inc), lambda b, t: (0, 0))],
        out_specs=pl.BlockSpec((1, rows, rows), lambda b, t: (b, 0, 0)),
        out_shape=jax.ShapeDtypeStruct((B, rows, rows), jnp.float32),
        compiler_params=cp_stats,
    )(xwin, w_all_bf)

    gyy = g[:, :bd, :bd].sum(axis=0)                     # sum_{B,L} Y Y^T
    ysum_b = g[:, :bd, bd]                               # per-batch sum_L Y
    ysum = ysum_b.sum(axis=0)                            # (bd,)

    # BN1 (training-mode, biased stats over B*L); flat channel = br*depth + ch.
    mu1 = ysum / n_cols
    var1 = jnp.diagonal(gyy) / n_cols - mu1 * mu1
    scale1 = params["bn1_g"].reshape(bd) * lax.rsqrt(var1 + EPS)
    off1 = params["bn1_b"].reshape(bd) - mu1 * scale1

    # SE head (tiny: (B, bd) -> (B, depth)) in plain JAX.
    z = scale1[None, :] * (ysum_b / L) + off1[None, :]
    h = jnp.dot(z, params["w1"].T, precision=hi) + params["b1"]
    h = jnp.where(h >= 0, h, params["a_se"] * h)
    mask = jax.nn.sigmoid(jnp.dot(h, params["w2"].T, precision=hi) + params["b2"])

    # o1 = ouconvs[0](BN1(Y)) = A @ Y + c1: moments derived analytically.
    A = params["wou1"] * scale1[None, :]                 # (depth, bd)
    c1 = jnp.dot(params["wou1"], off1, precision=hi)     # (depth,)
    Ay = jnp.dot(A, ysum, precision=hi)
    s1 = Ay + c1 * n_cols
    g1 = (jnp.dot(jnp.dot(A, gyy, precision=hi), A.T, precision=hi)
          + jnp.outer(Ay, c1) + jnp.outer(c1, Ay) + n_cols * jnp.outer(c1, c1))
    mu_o1 = s1 / n_cols
    var_o1 = jnp.diagonal(g1) / n_cols - mu_o1 * mu_o1
    scale3 = params["bn3_g"] * lax.rsqrt(var_o1 + EPS)
    off3 = params["bn3_b"] - mu_o1 * scale3

    # BN4 statistics (o2 is affine in o1).
    a2 = params["wou2"] * scale3[None, :]
    c2 = jnp.dot(params["wou2"], off3, precision=hi)
    mean_o2 = jnp.dot(a2, mu_o1, precision=hi) + c2
    cov1 = g1 / n_cols - jnp.outer(mu_o1, mu_o1)
    var_o2 = jnp.einsum("ij,jk,ik->i", a2, cov1, a2, precision=hi)
    scale4 = params["bn4_g"] * lax.rsqrt(var_o2 + EPS)
    off4 = params["bn4_b"] - mean_o2 * scale4
    w_f = scale4[:, None] * a2                           # (depth, depth)
    b_f = scale4 * c2 + off4

    # Everything folded into one (depth, n_off*inc) weight + bias.
    w_fin = jnp.dot(jnp.dot(w_f, A, precision=hi), w_all_q, precision=hi)
    bias_f = jnp.dot(w_f, c1, precision=hi) + b_f

    # ---------------- apply pass -------------------------------------------
    a_out = jnp.reshape(jnp.asarray(params["a_out"], jnp.float32), (1,))
    out = pl.pallas_call(
        functools.partial(_apply_kernel, n_off=n_off, tile=tile),
        grid=(B, n_lt),
        in_specs=[x_spec,
                  pl.BlockSpec((depth, n_off * inc), lambda b, t: (0, 0)),
                  pl.BlockSpec((depth, 1), lambda b, t: (0, 0)),
                  pl.BlockSpec((1, depth, 1), lambda b, t: (b, 0, 0)),
                  pl.BlockSpec(memory_space=pltpu.MemorySpace.SMEM)],
        out_specs=pl.BlockSpec((1, depth, tile), lambda b, t: (b, 0, t)),
        out_shape=jax.ShapeDtypeStruct((B, depth, Lp), out_dtype),
        compiler_params=cp_apply,
    )(xwin, w_fin.astype(jnp.bfloat16), bias_f.reshape(depth, 1),
      mask.reshape(B, depth, 1), a_out)
    if need_mask:
        out = out[:, :, :L]
    return out


# ---------------------------------------------------------------------------
# Pure-JAX reference (mirrors the PyTorch forward, training-mode BN)
# ---------------------------------------------------------------------------
def multi_aspp_reference(x, params):
    hi = lax.Precision.HIGHEST
    wconv = params["wconv"]
    branchs = wconv.shape[0]
    feas = []
    for br in range(branchs):
        dil = br + 1
        y = lax.conv_general_dilated(
            x, wconv[br], window_strides=(1,), padding=[(dil, dil)],
            rhs_dilation=(dil,), dimension_numbers=("NCH", "OIH", "NCH"),
            precision=hi)
        mu = y.mean(axis=(0, 2), keepdims=True)
        var = ((y - mu) ** 2).mean(axis=(0, 2), keepdims=True)
        y = (y - mu) * lax.rsqrt(var + EPS) * params["bn1_g"][br][None, :, None] \
            + params["bn1_b"][br][None, :, None]
        feas.append(y)
    feas = jnp.concatenate(feas, axis=1)

    z = feas.mean(axis=2)
    h = jnp.dot(z, params["w1"].T, precision=hi) + params["b1"]
    h = jnp.where(h >= 0, h, params["a_se"] * h)
    mask = jax.nn.sigmoid(jnp.dot(h, params["w2"].T, precision=hi) + params["b2"])

    o1 = jnp.einsum("oc,bcl->bol", params["wou1"], feas, precision=hi)
    mu1 = o1.mean(axis=(0, 2), keepdims=True)
    var1 = ((o1 - mu1) ** 2).mean(axis=(0, 2), keepdims=True)
    o1 = (o1 - mu1) * lax.rsqrt(var1 + EPS) * params["bn3_g"][None, :, None] \
        + params["bn3_b"][None, :, None]
    o2 = jnp.einsum("oc,bcl->bol", params["wou2"], o1, precision=hi)
    mu2 = o2.mean(axis=(0, 2), keepdims=True)
    var2 = ((o2 - mu2) ** 2).mean(axis=(0, 2), keepdims=True)
    o2 = (o2 - mu2) * lax.rsqrt(var2 + EPS) * params["bn4_g"][None, :, None] \
        + params["bn4_b"][None, :, None]

    out = mask[:, :, None] * o2
    return jnp.where(out >= 0, out, params["a_out"] * out)


if __name__ == "__main__":
    B, inc, L = 2, 4, 16
    depth, branchs, reduction = 8, 5, 4
    hidden = depth * branchs // reduction

    f32 = jnp.float32
    key = jax.random.PRNGKey(0)
    ks = jax.random.split(key, 16)
    params = dict(
        wconv=0.3 * jax.random.normal(ks[0], (branchs, depth, inc, 3), f32),
        bn1_g=1.0 + 0.1 * jax.random.normal(ks[1], (branchs, depth), f32),
        bn1_b=0.1 * jax.random.normal(ks[2], (branchs, depth), f32),
        w1=0.2 * jax.random.normal(ks[3], (hidden, depth * branchs), f32),
        b1=0.1 * jax.random.normal(ks[4], (hidden,), f32),
        w2=0.2 * jax.random.normal(ks[5], (depth, hidden), f32),
        b2=0.1 * jax.random.normal(ks[6], (depth,), f32),
        wou1=0.2 * jax.random.normal(ks[7], (depth, depth * branchs), f32),
        wou2=0.3 * jax.random.normal(ks[8], (depth, depth), f32),
        bn3_g=1.0 + 0.1 * jax.random.normal(ks[9], (depth,), f32),
        bn3_b=0.1 * jax.random.normal(ks[10], (depth,), f32),
        bn4_g=1.0 + 0.1 * jax.random.normal(ks[11], (depth,), f32),
        bn4_b=0.1 * jax.random.normal(ks[12], (depth,), f32),
        a_se=0.25,   # nn.PReLU() default init
        a_out=0.25,
    )
    x = jax.random.normal(ks[13], (B, inc, L), f32)

    fwd = jax.jit(multi_aspp_block)
    out = jax.block_until_ready(fwd(x, params))
    ref = jax.block_until_ready(multi_aspp_reference(x, params))
    assert out.shape == (B, depth, L)
    max_err = float(jnp.max(jnp.abs(out - ref)))
    # bf16 MXU operands vs an f32-HIGHEST reference
    assert jnp.allclose(out, ref, atol=2e-2, rtol=2e-2), max_err
    print("KERNEL_OK")
</pallas_src>

<mosaic_0001>
module attributes {stable_mosaic.version = 11 : i64} {
  func.func @_stats_kernel(%arg0: i32, %arg1: i32, %arg2: memref<1x1x4x138xbf16, #tpu.memory_space<vmem>>, %arg3: memref<48x44xbf16, #tpu.memory_space<vmem>>, %arg4: memref<1x48x48xf32, #tpu.memory_space<vmem>>) attributes {dimension_semantics = [#tpu.dimension_semantics<parallel>, #tpu.dimension_semantics<arbitrary>], iteration_bounds = array<i64: 2, 1>, scalar_prefetch = 0 : i64, scratch_operands = 0 : i64, tpu.core_type = #tpu.core_type<tc>, window_params = [{transform_indices = @transform_0, window_bounds = array<i64: 1, 1, 4, 138>}, {pipeline_mode = #tpu.pipeline_mode<synchronous>, transform_indices = @transform_1, window_bounds = array<i64: 48, 44>}, {transform_indices = @transform_2, window_bounds = array<i64: 1, 48, 48>}]} {
    %c0_i32 = arith.constant 0 : i32
    %0 = arith.cmpi eq, %arg1, %c0_i32 : i32
    %1 = arith.extui %0 : i1 to i32
    %c0_i32_0 = arith.constant 0 : i32
    %2 = arith.cmpi ne, %1, %c0_i32_0 : i32
    scf.if %2 {
      %cst_13 = arith.constant 0.000000e+00 : f32
      %42 = vector.broadcast %cst_13 : f32 to vector<1x48x48xf32>
      %c0_14 = arith.constant 0 : index
      %c0_15 = arith.constant 0 : index
      %c0_16 = arith.constant 0 : index
      %43 = vector.load %arg4[%c0_14, %c0_15, %c0_16] : memref<1x48x48xf32, #tpu.memory_space<vmem>>, vector<1x48x48xf32>
      tpu.vector_store %arg4[%c0_14, %c0_15, %c0_16], %42 {strides = array<i32>} : memref<1x48x48xf32, #tpu.memory_space<vmem>>, vector<1x48x48xf32>,
    } else {
    }
    %c0 = arith.constant 0 : index
    %c0_1 = arith.constant 0 : index
    %c0_2 = arith.constant 0 : index
    %c0_3 = arith.constant 0 : index
    %3 = vector.load %arg2[%c0, %c0_1, %c0_2, %c0_3] : memref<1x1x4x138xbf16, #tpu.memory_space<vmem>>, vector<1x1x4x138xbf16>
    %4 = vector.shape_cast %3 : vector<1x1x4x138xbf16> to vector<4x138xbf16>
    %5 = vector.extract_strided_slice %4 {offsets = [0, 0], sizes = [4, 128], strides = [1, 1]} : vector<4x138xbf16> to vector<4x128xbf16>
    %6 = vector.extract_strided_slice %4 {offsets = [0, 1], sizes = [4, 128], strides = [1, 1]} : vector<4x138xbf16> to vector<4x128xbf16>
    %7 = vector.extract_strided_slice %4 {offsets = [0, 2], sizes = [4, 128], strides = [1, 1]} : vector<4x138xbf16> to vector<4x128xbf16>
    %8 = vector.extract_strided_slice %4 {offsets = [0, 3], sizes = [4, 128], strides = [1, 1]} : vector<4x138xbf16> to vector<4x128xbf16>
    %9 = vector.extract_strided_slice %4 {offsets = [0, 4], sizes = [4, 128], strides = [1, 1]} : vector<4x138xbf16> to vector<4x128xbf16>
    %10 = vector.extract_strided_slice %4 {offsets = [0, 5], sizes = [4, 128], strides = [1, 1]} : vector<4x138xbf16> to vector<4x128xbf16>
    %11 = vector.extract_strided_slice %4 {offsets = [0, 6], sizes = [4, 128], strides = [1, 1]} : vector<4x138xbf16> to vector<4x128xbf16>
    %12 = vector.extract_strided_slice %4 {offsets = [0, 7], sizes = [4, 128], strides = [1, 1]} : vector<4x138xbf16> to vector<4x128xbf16>
    %13 = vector.extract_strided_slice %4 {offsets = [0, 8], sizes = [4, 128], strides = [1, 1]} : vector<4x138xbf16> to vector<4x128xbf16>
    %14 = vector.extract_strided_slice %4 {offsets = [0, 9], sizes = [4, 128], strides = [1, 1]} : vector<4x138xbf16> to vector<4x128xbf16>
    %15 = vector.extract_strided_slice %4 {offsets = [0, 10], sizes = [4, 128], strides = [1, 1]} : vector<4x138xbf16> to vector<4x128xbf16>
    %16 = tpu.concatenate %5, %6, %7, %8, %9, %10, %11, %12, %13, %14, %15 in 0 : vector<4x128xbf16>, vector<4x128xbf16>, vector<4x128xbf16>, vector<4x128xbf16>, vector<4x128xbf16>, vector<4x128xbf16>, vector<4x128xbf16>, vector<4x128xbf16>, vector<4x128xbf16>, vector<4x128xbf16>, vector<4x128xbf16> -> vector<44x128xbf16>
    %c0_4 = arith.constant 0 : index
    %c0_5 = arith.constant 0 : index
    %17 = vector.load %arg3[%c0_4, %c0_5] : memref<48x44xbf16, #tpu.memory_space<vmem>>, vector<48x44xbf16>
    %cst = arith.constant dense<0.000000e+00> : vector<48x128xf32>
    %18 = tpu.matmul %17, %16, %cst {dimension_numbers = #tpu.dot_dimension_numbers<[1], [0], [0], [1], [0, 0, 1, 1], [], []>} : vector<48x44xbf16>, vector<44x128xbf16>, vector<48x128xf32> -> vector<48x128xf32>
    %c128_i32 = arith.constant 128 : i32
    %19 = arith.muli %arg1, %c128_i32 : i32
    %20 = tpu.iota {dimensions = array<i32: 1>} : vector<1x128xi32>
    %21 = vector.broadcast %19 : i32 to vector<1x128xi32>
    %22 = arith.addi %21, %20 : vector<1x128xi32>
    %c16_i32 = arith.constant 16 : i32
    %23 = vector.broadcast %c16_i32 : i32 to vector<1x128xi32>
    %24 = arith.cmpi slt, %22, %23 : vector<1x128xi32>
    %25 = arith.extui %24 : vector<1x128xi1> to vector<1x128xi32>
    %26 = arith.sitofp %25 : vector<1x128xi32> to vector<1x128xf32>
    %27 = vector.broadcast %26 : vector<1x128xf32> to vector<48x128xf32>
    %28 = arith.mulf %18, %27 : vector<48x128xf32>
    %29 = tpu.iota {dimensions = array<i32: 0>} : vector<48x128xi32>
    %c40_i32 = arith.constant 40 : i32
    %30 = vector.broadcast %c40_i32 : i32 to vector<48x128xi32>
    %31 = arith.cmpi eq, %29, %30 : vector<48x128xi32>
    %32 = vector.shape_cast %26 : vector<1x128xf32> to vector<1x128xf32>
    %33 = vector.broadcast %32 : vector<1x128xf32> to vector<48x128xf32>
    %34 = arith.select %31, %33, %28 : vector<48x128xi1>, vector<48x128xf32>
    %c0_6 = arith.constant 0 : index
    %c0_7 = arith.constant 0 : index
    %c0_8 = arith.constant 0 : index
    %35 = vector.load %arg4[%c0_6, %c0_7, %c0_8] : memref<1x48x48xf32, #tpu.memory_space<vmem>>, vector<1x48x48xf32>
    %36 = vector.shape_cast %35 : vector<1x48x48xf32> to vector<48x48xf32>
    %cst_9 = arith.constant dense<0.000000e+00> : vector<48x48xf32>
    %37 = tpu.matmul %34, %34, %cst_9 {dimension_numbers = #tpu.dot_dimension_numbers<[1], [1], [0], [0], [0, 0, 1, 0], [], []>} : vector<48x128xf32>, vector<48x128xf32>, vector<48x48xf32> -> vector<48x48xf32>
    %38 = arith.addf %36, %37 : vector<48x48xf32>
    %c0_10 = arith.constant 0 : index
    %c0_11 = arith.constant 0 : index
    %c0_12 = arith.constant 0 : index
    %39 = vector.load %arg4[%c0_10, %c0_11, %c0_12] : memref<1x48x48xf32, #tpu.memory_space<vmem>>, vector<1x48x48xf32>
    %40 = vector.shape_cast %39 : vector<1x48x48xf32> to vector<48x48xf32>
    %41 = vector.shape_cast %38 : vector<48x48xf32> to vector<1x48x48xf32>
    tpu.vector_store %arg4[%c0_10, %c0_11, %c0_12], %41 {strides = array<i32>} : memref<1x48x48xf32, #tpu.memory_space<vmem>>, vector<1x48x48xf32>,
    return
  }
  func.func @transform_0(%arg0: i32, %arg1: i32) -> (i32, i32, i32, i32) {
    %c0_i32 = arith.constant 0 : i32
    %c0_i32_0 = arith.constant 0 : i32
    %c0_i32_1 = arith.constant 0 : i32
    return %arg0, %arg1, %c0_i32, %c0_i32_0 : i32, i32, i32, i32
  }
  func.func @transform_1(%arg0: i32, %arg1: i32) -> (i32, i32) {
    %c0_i32 = arith.constant 0 : i32
    %c0_i32_0 = arith.constant 0 : i32
    %c0_i32_1 = arith.constant 0 : i32
    return %c0_i32, %c0_i32_0 : i32, i32
  }
  func.func @transform_2(%arg0: i32, %arg1: i32) -> (i32, i32, i32) {
    %c0_i32 = arith.constant 0 : i32
    %c0_i32_0 = arith.constant 0 : i32
    %c0_i32_1 = arith.constant 0 : i32
    return %arg0, %c0_i32, %c0_i32_0 : i32, i32, i32
  }
}

module attributes {stable_mosaic.version = 11 : i64} {
  func.func @_apply_kernel(%arg0: i32, %arg1: i32, %arg2: memref<1x1x4x138xbf16, #tpu.memory_space<vmem>>, %arg3: memref<8x44xbf16, #tpu.memory_space<vmem>>, %arg4: memref<8x1xf32, #tpu.memory_space<vmem>>, %arg5: memref<1x8x1xf32, #tpu.memory_space<vmem>>, %arg6: memref<1xf32, #tpu.memory_space<smem>>, %arg7: memref<1x8x128xf32, #tpu.memory_space<vmem>>) attributes {dimension_semantics = [#tpu.dimension_semantics<parallel>, #tpu.dimension_semantics<parallel>], iteration_bounds = array<i64: 2, 1>, scalar_prefetch = 0 : i64, scratch_operands = 0 : i64, tpu.core_type = #tpu.core_type<tc>, window_params = [{transform_indices = @transform_0, window_bounds = array<i64: 1, 1, 4, 138>}, {pipeline_mode = #tpu.pipeline_mode<synchronous>, transform_indices = @transform_1, window_bounds = array<i64: 8, 44>}, {pipeline_mode = #tpu.pipeline_mode<synchronous>, transform_indices = @transform_2, window_bounds = array<i64: 8, 1>}, {transform_indices = @transform_3, window_bounds = array<i64: 1, 8, 1>}, {transform_indices = @transform_4, window_bounds = array<i64: 1>}, {transform_indices = @transform_5, window_bounds = array<i64: 1, 8, 128>}]} {
    %c0 = arith.constant 0 : index
    %c0_0 = arith.constant 0 : index
    %c0_1 = arith.constant 0 : index
    %c0_2 = arith.constant 0 : index
    %0 = vector.load %arg2[%c0, %c0_0, %c0_1, %c0_2] : memref<1x1x4x138xbf16, #tpu.memory_space<vmem>>, vector<1x1x4x138xbf16>
    %1 = vector.shape_cast %0 : vector<1x1x4x138xbf16> to vector<4x138xbf16>
    %2 = vector.extract_strided_slice %1 {offsets = [0, 0], sizes = [4, 128], strides = [1, 1]} : vector<4x138xbf16> to vector<4x128xbf16>
    %3 = vector.extract_strided_slice %1 {offsets = [0, 1], sizes = [4, 128], strides = [1, 1]} : vector<4x138xbf16> to vector<4x128xbf16>
    %4 = vector.extract_strided_slice %1 {offsets = [0, 2], sizes = [4, 128], strides = [1, 1]} : vector<4x138xbf16> to vector<4x128xbf16>
    %5 = vector.extract_strided_slice %1 {offsets = [0, 3], sizes = [4, 128], strides = [1, 1]} : vector<4x138xbf16> to vector<4x128xbf16>
    %6 = vector.extract_strided_slice %1 {offsets = [0, 4], sizes = [4, 128], strides = [1, 1]} : vector<4x138xbf16> to vector<4x128xbf16>
    %7 = vector.extract_strided_slice %1 {offsets = [0, 5], sizes = [4, 128], strides = [1, 1]} : vector<4x138xbf16> to vector<4x128xbf16>
    %8 = vector.extract_strided_slice %1 {offsets = [0, 6], sizes = [4, 128], strides = [1, 1]} : vector<4x138xbf16> to vector<4x128xbf16>
    %9 = vector.extract_strided_slice %1 {offsets = [0, 7], sizes = [4, 128], strides = [1, 1]} : vector<4x138xbf16> to vector<4x128xbf16>
    %10 = vector.extract_strided_slice %1 {offsets = [0, 8], sizes = [4, 128], strides = [1, 1]} : vector<4x138xbf16> to vector<4x128xbf16>
    %11 = vector.extract_strided_slice %1 {offsets = [0, 9], sizes = [4, 128], strides = [1, 1]} : vector<4x138xbf16> to vector<4x128xbf16>
    %12 = vector.extract_strided_slice %1 {offsets = [0, 10], sizes = [4, 128], strides = [1, 1]} : vector<4x138xbf16> to vector<4x128xbf16>
    %13 = tpu.concatenate %2, %3, %4, %5, %6, %7, %8, %9, %10, %11, %12 in 0 : vector<4x128xbf16>, vector<4x128xbf16>, vector<4x128xbf16>, vector<4x128xbf16>, vector<4x128xbf16>, vector<4x128xbf16>, vector<4x128xbf16>, vector<4x128xbf16>, vector<4x128xbf16>, vector<4x128xbf16>, vector<4x128xbf16> -> vector<44x128xbf16>
    %c0_3 = arith.constant 0 : index
    %c0_4 = arith.constant 0 : index
    %14 = vector.load %arg3[%c0_3, %c0_4] : memref<8x44xbf16, #tpu.memory_space<vmem>>, vector<8x44xbf16>
    %cst = arith.constant dense<0.000000e+00> : vector<8x128xf32>
    %15 = tpu.matmul %14, %13, %cst {dimension_numbers = #tpu.dot_dimension_numbers<[1], [0], [0], [1], [0, 0, 1, 1], [], []>} : vector<8x44xbf16>, vector<44x128xbf16>, vector<8x128xf32> -> vector<8x128xf32>
    %c0_5 = arith.constant 0 : index
    %c0_6 = arith.constant 0 : index
    %16 = vector.load %arg4[%c0_5, %c0_6] : memref<8x1xf32, #tpu.memory_space<vmem>>, vector<8x1xf32>
    %17 = vector.broadcast %16 : vector<8x1xf32> to vector<8x128xf32>
    %18 = arith.addf %15, %17 : vector<8x128xf32>
    %c0_7 = arith.constant 0 : index
    %c0_8 = arith.constant 0 : index
    %c0_9 = arith.constant 0 : index
    %19 = vector.load %arg5[%c0_7, %c0_8, %c0_9] : memref<1x8x1xf32, #tpu.memory_space<vmem>>, vector<1x8x1xf32>
    %20 = vector.shape_cast %19 : vector<1x8x1xf32> to vector<8x1xf32>
    %21 = vector.broadcast %20 : vector<8x1xf32> to vector<8x128xf32>
    %22 = arith.mulf %18, %21 : vector<8x128xf32>
    %c0_10 = arith.constant 0 : index
    %23 = memref.load %arg6[%c0_10] : memref<1xf32, #tpu.memory_space<smem>>
    %cst_11 = arith.constant 0.000000e+00 : f32
    %24 = vector.broadcast %cst_11 : f32 to vector<8x128xf32>
    %25 = arith.cmpf oge, %22, %24 : vector<8x128xf32>
    %26 = vector.broadcast %23 : f32 to vector<8x128xf32>
    %27 = arith.mulf %26, %22 : vector<8x128xf32>
    %28 = arith.select %25, %22, %27 : vector<8x128xi1>, vector<8x128xf32>
    %c0_12 = arith.constant 0 : index
    %c0_13 = arith.constant 0 : index
    %c0_14 = arith.constant 0 : index
    %29 = vector.load %arg7[%c0_12, %c0_13, %c0_14] : memref<1x8x128xf32, #tpu.memory_space<vmem>>, vector<1x8x128xf32>
    %30 = vector.shape_cast %29 : vector<1x8x128xf32> to vector<8x128xf32>
    %31 = vector.shape_cast %28 : vector<8x128xf32> to vector<1x8x128xf32>
    tpu.vector_store %arg7[%c0_12, %c0_13, %c0_14], %31 {strides = array<i32>} : memref<1x8x128xf32, #tpu.memory_space<vmem>>, vector<1x8x128xf32>,
    return
  }
  func.func @transform_0(%arg0: i32, %arg1: i32) -> (i32, i32, i32, i32) {
    %c0_i32 = arith.constant 0 : i32
    %c0_i32_0 = arith.constant 0 : i32
    %c0_i32_1 = arith.constant 0 : i32
    return %arg0, %arg1, %c0_i32, %c0_i32_0 : i32, i32, i32, i32
  }
  func.func @transform_1(%arg0: i32, %arg1: i32) -> (i32, i32) {
    %c0_i32 = arith.constant 0 : i32
    %c0_i32_0 = arith.constant 0 : i32
    %c0_i32_1 = arith.constant 0 : i32
    return %c0_i32, %c0_i32_0 : i32, i32
  }
  func.func @transform_2(%arg0: i32, %arg1: i32) -> (i32, i32) {
    %c0_i32 = arith.constant 0 : i32
    %c0_i32_0 = arith.constant 0 : i32
    %c0_i32_1 = arith.constant 0 : i32
    return %c0_i32, %c0_i32_0 : i32, i32
  }
  func.func @transform_3(%arg0: i32, %arg1: i32) -> (i32, i32, i32) {
    %c0_i32 = arith.constant 0 : i32
    %c0_i32_0 = arith.constant 0 : i32
    %c0_i32_1 = arith.constant 0 : i32
    return %arg0, %c0_i32, %c0_i32_0 : i32, i32, i32
  }
  func.func @transform_4(%arg0: i32, %arg1: i32) -> i32 {
    %c0_i32 = arith.constant 0 : i32
    %c0_i32_0 = arith.constant 0 : i32
    return %c0_i32 : i32
  }
  func.func @transform_5(%arg0: i32, %arg1: i32) -> (i32, i32, i32) {
    %c0_i32 = arith.constant 0 : i32
    %c0_i32_0 = arith.constant 0 : i32
    return %arg0, %c0_i32, %arg1 : i32, i32, i32
  }
}

</mosaic_0001>

<llo_original>
// kernel: multi_aspp_block.2
$region0: #{multi_aspp_block.2}
  #allocation0 [shape = 'u32[]', space=smem, size = 0x4, offset = 0x4, fixed_abs, tag = 'smem constant byte address 0x4 - core index']
  #allocation1 [shape = 'u32[144,128]{1,0:T(1,128)}', space=vmem, size = 0x12000, scoped, tag = 'internal scratch']
  %s0 = inlined_call_operand.vmem [shape: bf16[2,1,4,138], index: 0, kind: input, shape index: {}]
  %s1 = inlined_call_operand.vmem [shape: bf16[48,44], index: 1, kind: input, shape index: {}]
  %s2 = inlined_call_operand.vmem [shape: f32[2,48,48], index: 2, kind: output, shape index: {}]
  %s3 = sld [smem:[#allocation0]]
  $region45: #{multi_aspp_block.2} parent=0
    _
  %s5 = ssub.s32 1, %s3
  %s6 = scalar_select 0, %s5, %s3
  loop: start=0, step=1, limit=4
  $region2: #{multi_aspp_block.2} parent=0 // loop_pre_header
    _
  $region3: #{multi_aspp_block.2} parent=0 // loop_header
    %s8 = sphi 0, %s12
    %p9 = scmp.ge.s32.totalorder %s8, 4
    %s15 = sphi 0, %s27
    %s16 = sphi 0, %s23
    %s17 = sphi 0, %s15
    %s18 = sphi 0, %s16
    %s19 = sphi 0, %s17
    %s20 = sphi 0, %s18
    %s32 = sphi 0, %s34
    %s35 = sphi 0, %s32
    %s36 = sphi 0, %s35
    %s52 = sphi 0, %s36
    %s56 = sphi 0, %s56
    %s58 = sphi 0, %s56
    %s59 = sphi 0, %s58
    %s73 = sphi 0, %s59
    %s79 = sphi 0, %s81
    %s82 = sphi 0, %s79
    %s83 = sphi 0, %s82
    %s99 = sphi 0, %s83
  $region4: #{multi_aspp_block.2} parent=0 // loop_header_branch
    %11 = sbr.rel (%p9) target = $region8
  $region5: #{multi_aspp_block.2} parent=0 // loop_body
    %s13 = ssub.s32 %s8, 1
    %s14 = ssub.s32 %s8, 2
    %s21 = sadd.s32 1, %s16
    %p22 = scmp.ge.s32.totalorder %s21, 1
    %s23 = scalar_select %p22, 0, %s21
    %s24 = sadd.s32 1, %s15
    %s25 = scalar_select %p22, %s24, %s15
    %p26 = scmp.ge.s32.totalorder %s25, 2
    %s27 = scalar_select %p26, 0, %s25
    %s28 = ssub.s32 %s15, %s27
    %s29 = ssub.s32 %s16, %s23
    %s30 = sor.u32 %s28, %s29
    %p31 = scmp.eq.s32.totalorder %s30, 0
    %s33 = sadd.s32 %s32, 1
    %s34 = scalar_select %p31, %s32, %s33
    %p37 = pneg %p31
    %p38 = scmp.eq.s32.totalorder %s8, 1
    %p39 = por %p37, %p38
    %p40 = scmp.ne.s32.totalorder %s32, %s35
    %p41 = scmp.eq.s32.totalorder %s8, 0
    %p42 = por %p40, %p41
    %p43 = scmp.ne.s32.totalorder %s32, %s35
    %p44 = scmp.eq.s32.totalorder %s13, 1
    %p45 = por %p43, %p44
    %p46 = scmp.ne.s32.totalorder %s35, %s36
    %p47 = scmp.eq.s32.totalorder %s13, 0
    %p48 = por %p46, %p47
    %p49 = scmp.ne.s32.totalorder %s35, %s36
    %p50 = scmp.eq.s32.totalorder %s14, 1
    %p51 = por %p49, %p50
    %p53 = scmp.ne.s32.totalorder %s36, %s52
    %p54 = scmp.eq.s32.totalorder %s14, 0
    %p55 = por %p53, %p54
    %s57 = sadd.s32 %s56, 1
    %p60 = scmp.eq.s32.totalorder %s8, 1
    %p61 = scmp.ne.s32.totalorder %s56, %s58
    %p62 = scmp.eq.s32.totalorder %s8, 0
    %p63 = por %p61, %p62
    %p64 = scmp.ne.s32.totalorder %s56, %s58
    %p65 = scmp.eq.s32.totalorder %s13, 1
    %p66 = por %p64, %p65
    %p67 = scmp.ne.s32.totalorder %s58, %s59
    %p68 = scmp.eq.s32.totalorder %s13, 0
    %p69 = por %p67, %p68
    %p70 = scmp.ne.s32.totalorder %s58, %s59
    %p71 = scmp.eq.s32.totalorder %s14, 1
    %p72 = por %p70, %p71
    %p74 = scmp.ne.s32.totalorder %s59, %s73
    %p75 = scmp.eq.s32.totalorder %s14, 0
    %p76 = por %p74, %p75
    %s77 = ssub.s32 %s15, %s27
    %p78 = scmp.eq.s32.totalorder %s77, 0
    %s80 = sadd.s32 %s79, 1
    %s81 = scalar_select %p78, %s79, %s80
    %p84 = pneg %p78
    %p85 = scmp.eq.s32.totalorder %s8, 1
    %p86 = por %p84, %p85
    %p87 = scmp.ne.s32.totalorder %s79, %s82
    %p88 = scmp.eq.s32.totalorder %s8, 0
    %p89 = por %p87, %p88
    %p90 = scmp.ne.s32.totalorder %s79, %s82
    %p91 = scmp.eq.s32.totalorder %s13, 1
    %p92 = por %p90, %p91
    %p93 = scmp.ne.s32.totalorder %s82, %s83
    %p94 = scmp.eq.s32.totalorder %s13, 0
    %p95 = por %p93, %p94
    %p96 = scmp.ne.s32.totalorder %s82, %s83
    %p97 = scmp.eq.s32.totalorder %s14, 1
    %p98 = por %p96, %p97
    %p100 = scmp.ne.s32.totalorder %s83, %s99
    %p101 = scmp.eq.s32.totalorder %s14, 0
    %p102 = por %p100, %p101
    %p103 = scmp.le.s32.totalorder 1, %s8
    %p104 = scmp.lt.s32.totalorder %s8, 3
    %p105 = pnand %p103, %p104
    %p106 = pneg %p105
    // Predicated region
    $region9: #{multi_aspp_block.2} parent=5 // pred_check
      _
    $region10: #{multi_aspp_block.2} parent=5 // pred_check_branch
      %108 = sbr.rel (%p105) target = $region12
    $region11: #{multi_aspp_block.2} parent=5 // pred_region
      %s109 = ssub.s32 %s8, 1
      // Predicated region
      $region13: #{multi_aspp_block.2} parent=11 // pred_check
        %p110 = pneg %p69
      $region14: #{multi_aspp_block.2} parent=11 // pred_check_branch
        %112 = sbr.rel (%p110) target = $region16
      $region15: #{multi_aspp_block.2} parent=11 // pred_region
        _
      $region16: #{multi_aspp_block.2} parent=11 // pred_fallthru
        _
    $region12: #{multi_aspp_block.2} parent=5 // pred_fallthru
      _
    %p113 = scmp.lt.s32.totalorder %s8, 2
    // Predicated region
    $region17: #{multi_aspp_block.2} parent=5 // pred_check
      %p114 = pneg %p113
    $region18: #{multi_aspp_block.2} parent=5 // pred_check_branch
      %116 = sbr.rel (%p114) target = $region20
    $region19: #{multi_aspp_block.2} parent=5 // pred_region
      // Predicated region
      $region21: #{multi_aspp_block.2} parent=19 // pred_check
        %p117 = pneg %p42
      $region22: #{multi_aspp_block.2} parent=19 // pred_check_branch
        %119 = sbr.rel (%p117) target = $region24
      $region23: #{multi_aspp_block.2} parent=19 // pred_region
        %p120 = scmp.lt.s32.totalorder %s15, 1
        %s121 = scalar_select %p120, %s15, 1
        %p122 = scmp.lt.s32.totalorder %s16, 0
        %s123 = scalar_select %p122, %s16, 0
        %s124 = smul.addr %s123, 2
        %s125 = smul.addr %s121, 2
        %s126 = sadd.s32 %s124, %s125
        %s127 = smul.addr %s126, 2
        %s128 = scalar_lea.vmem %s0, %s127
      $region24: #{multi_aspp_block.2} parent=19 // pred_fallthru
        _
    $region20: #{multi_aspp_block.2} parent=5 // pred_fallthru
      _
    %p129 = scmp.le.s32.totalorder 1, %s8
    %p130 = scmp.lt.s32.totalorder %s8, 3
    %p131 = pnand %p129, %p130
    %p132 = pneg %p131
    // Predicated region
    $region25: #{multi_aspp_block.2} parent=5 // pred_check
      _
    $region26: #{multi_aspp_block.2} parent=5 // pred_check_branch
      %134 = sbr.rel (%p131) target = $region28
    $region27: #{multi_aspp_block.2} parent=5 // pred_region
      %s135 = ssub.s32 %s8, 1
      %p136 = scmp.lt.s32.totalorder %s17, 1
      %s137 = scalar_select %p136, %s17, 1
      %p138 = scmp.lt.s32.totalorder %s18, 0
      %s139 = scalar_select %p138, %s18, 0
      %s140 = smul.addr %s139, 2
      %s141 = smul.addr %s137, 2
      %s142 = sadd.s32 %s140, %s141
      %s143 = smul.addr %s142, 2
      %s144 = scalar_lea.vmem %s0, %s143
      %p145 = pneg %p48
      %p146 = pneg %p45
      %p147 = pneg %p69
      %p148 = pneg %p66
      %p149 = pneg %p95
      %p150 = pneg %p92
      %p151 = scmp.lt.s32.totalorder %s17, 1
      %s152 = scalar_select %p151, %s17, 1
      %s153 = smul.addr %s152, 6
      %s154 = smul.addr %s153, 8
      %s155 = scalar_lea.vmem %s2, %s154
      %p156 = scmp.lt.s32.totalorder %s17, 1
      %s157 = scalar_select %p156, %s17, 1
      %p158 = scmp.lt.s32.totalorder %s18, 0
      %s159 = scalar_select %p158, %s18, 0
      %s160 = smul.addr %s159, 2
      %s161 = smul.addr %s157, 2
      %s162 = sadd.s32 %s160, %s161
      %s163 = smul.addr %s162, 2
      %s164 = scalar_lea.vmem %s0, %s163
      %p165 = scmp.lt.s32.totalorder %s17, 1
      %s166 = scalar_select %p165, %s17, 1
      %s167 = smul.addr %s166, 6
      %s168 = smul.addr %s167, 8
      %s169 = scalar_lea.vmem %s2, %s168
      %p171 = scmp.eq.s32.totalorder %s18, 0
      // Predicated region
      $region29: #{multi_aspp_block.2} parent=27 // pred_check
        %p172 = pneg %p171
      $region30: #{multi_aspp_block.2} parent=27 // pred_check_branch
        %174 = sbr.rel (%p172) target = $region32
      $region31: #{multi_aspp_block.2} parent=27 // pred_region
        %vm175 = vcmask 392192
        %176 = vst.msk [vmem:[%s169] sm:$0xff] %vm175, 0.0
        %177 = vst.msk [vmem:[%s169 + $0x8] sm:$0xff] %vm175, 0.0
        %178 = vst.msk [vmem:[%s169 + $0x10] sm:$0xff] %vm175, 0.0
        %179 = vst.msk [vmem:[%s169 + $0x18] sm:$0xff] %vm175, 0.0
        %180 = vst.msk [vmem:[%s169 + $0x20] sm:$0xff] %vm175, 0.0
        %181 = vst.msk [vmem:[%s169 + $0x28] sm:$0xff] %vm175, 0.0
      $region32: #{multi_aspp_block.2} parent=27 // pred_fallthru
        _
      %v182 = vld [vmem:[%s164] sm:$0xf]
      %v184 = vcombine.low %v182, %v182
      %v186 = vunpack.c.l.s4 1983009808
      %v187 = vunpack.c.0.s8 %v186
      %v188 = vlaneseq
      %v189 = vshrl.u32 %v188, 7
      %v190 = vsub.s32 %v187, %v189
      %v191 = vrot.slane %v184, %v190
      %v193 = vunpack.c.l.s4 1983009808
      %v194 = vunpack.c.0.s8 %v193
      %v195 = vlaneseq
      %v196 = vshrl.u32 %v195, 7
      %v197 = vsub.s32 %v194, %v196
      %v198 = vrot.slane %v182, %v197
      %v199 = vcombine.high %v191, %v191
      %200 = vrot.lane.b32.xlu0 %v191, 127
      %v201 = vpop.permute.xlu0 %200
      %202 = vrot.lane.b32.xlu0 %v199, 127
      %v203 = vpop.permute.xlu0 %202
      %vm204 = vcmask 1039360
      %v205 = vsel %vm204, %v201, %v203
      %v206 = vcombine.low %v198, %v198
      %207 = vrot.lane.b32.xlu0 %v206, 126
      %v208 = vpop.permute.xlu0 %207
      %209 = vrot.lane.b32.xlu0 %v198, 126
      %v210 = vpop.permute.xlu0 %209
      %vm211 = vcmask 1031168
      %v212 = vsel %vm211, %v208, %v210
      %v213 = vcombine.low %v191, %v191
      %214 = vrot.lane.b32.xlu0 %v213, 125
      %v215 = vpop.permute.xlu0 %214
      %216 = vrot.lane.b32.xlu0 %v191, 125
      %v217 = vpop.permute.xlu0 %216
      %vm218 = vcmask 1022976
      %v219 = vsel %vm218, %v215, %v217
      %v220 = vcombine.high %v198, %v198
      %221 = vrot.lane.b32.xlu0 %v198, 124
      %v222 = vpop.permute.xlu0 %221
      %223 = vrot.lane.b32.xlu0 %v220, 124
      %v224 = vpop.permute.xlu0 %223
      %vm225 = vcmask 1014784
      %v226 = vsel %vm225, %v222, %v224
      %227 = vrot.lane.b32.xlu0 %v191, 123
      %v228 = vpop.permute.xlu0 %227
      %229 = vrot.lane.b32.xlu0 %v199, 123
      %v230 = vpop.permute.xlu0 %229
      %vm231 = vcmask 1006592
      %v232 = vsel %vm231, %v228, %v230
      %233 = vrot.lane.b32.xlu0 %v206, 122
      %v234 = vpop.permute.xlu0 %233
      %235 = vrot.lane.b32.xlu0 %v198, 122
      %v236 = vpop.permute.xlu0 %235
      %vm237 = vcmask 998400
      %v238 = vsel %vm237, %v234, %v236
      %239 = vrot.lane.b32.xlu0 %v213, 121
      %v240 = vpop.permute.xlu0 %239
      %241 = vrot.lane.b32.xlu0 %v191, 121
      %v242 = vpop.permute.xlu0 %241
      %vm243 = vcmask 990208
      %v244 = vsel %vm243, %v240, %v242
      %245 = vrot.lane.b32.xlu0 %v198, 120
      %v246 = vpop.permute.xlu0 %245
      %247 = vrot.lane.b32.xlu0 %v220, 120
      %v248 = vpop.permute.xlu0 %247
      %vm249 = vcmask 982016
      %v250 = vsel %vm249, %v246, %v248
      %251 = vrot.lane.b32.xlu0 %v191, 119
      %v252 = vpop.permute.xlu0 %251
      %253 = vrot.lane.b32.xlu0 %v199, 119
      %v254 = vpop.permute.xlu0 %253
      %vm255 = vcmask 973824
      %v256 = vsel %vm255, %v252, %v254
      %257 = vrot.lane.b32.xlu0 %v206, 118
      %v258 = vpop.permute.xlu0 %257
      %259 = vrot.lane.b32.xlu0 %v198, 118
      %v260 = vpop.permute.xlu0 %259
      %vm261 = vcmask 965632
      %v262 = vsel %vm261, %v258, %v260
      %vm263 = vcmask 1041408
      %v266 = vsel %vm263, %v182, %v205
      %vm267 = vcmask 1043456
      %v269 = vsel %vm267, %v266, %v212
      %vm270 = vcmask 1045504
      %v272 = vsel %vm270, %v269, %v219
      %v276 = vsel %vm263, %v226, %v232
      %v278 = vsel %vm267, %v276, %v238
      %v280 = vsel %vm270, %v278, %v244
      %v284 = vsel %vm263, %v250, %v256
      %v286 = vsel %vm267, %v284, %v262
      %v287 = vld [vmem:[%s1] sm:$0xf]
      %v288 = vld [vmem:[%s1 + $0x4] sm:$0xf]
      %v289 = vld [vmem:[%s1 + $0x8] sm:$0xf]
      %v290 = vld [vmem:[%s1 + $0xc] sm:$0xf]
      %v291 = vld [vmem:[%s1 + $0x10] sm:$0xf]
      %v292 = vld [vmem:[%s1 + $0x14] sm:$0xf]
      %v299 = vunpack.c.l.b16 %v287
      %v300 = vunpack.c.l.b16 %v288
      %v301 = vunpack.c.l.b16 %v289
      %v302 = vunpack.c.l.b16 %v290
      %v303 = vunpack.c.l.b16 %v291
      %v304 = vunpack.c.l.b16 %v292
      %v305 = vpack.c.b16 %v300, %v299
      %v306 = vpack.c.b16 %v302, %v301
      %v307 = vpack.c.b16 %v304, %v303
      %vm308 = vcmask 359424
      %v310 = vsel %vm308, %v305, 0
      %v313 = vsel %vm308, %v306, 0
      %v316 = vsel %vm308, %v307, 0
      %v318 = vsel %vm270, %v286, 0
      %320 = vmatprep.subr.bf16.mxu0 0
      %321 = vmatpush1.bf16.msra.mxu0 %v272
      %322 = vmatprep.subr.bf16.mxu0 0
      %323 = vmatpush1.bf16.msra.mxu0 %v280
      %324 = vmatprep.subr.bf16.mxu0 0
      %325 = vmatpush1.bf16.msra.mxu0 %v318
      %326 = vmatprep.subr.bf16.mxu0 0
      %327 = vmatpush1.bf16.msra.mxu0 0
      %328 = vmatprep.subr.bf16.mxu0 0
      %329 = vmatpush1.bf16.msra.mxu0 0
      %330 = vmatprep.subr.bf16.mxu0 0
      %331 = vmatpush1.bf16.msra.mxu0 0
      %332 = vmatprep.subr.bf16.mxu0 0
      %333 = vmatpush1.bf16.msra.mxu0 0
      %334 = vmatprep.subr.bf16.mxu0 0
      %335 = vmatpush1.bf16.msra.mxu0 0
      %336 = vmatprep.subr.bf16.mxu0 0
      %337 = vmatpush1.bf16.msra.mxu0 0
      %338 = vmatprep.subr.bf16.mxu0 0
      %339 = vmatpush1.bf16.msra.mxu0 0
      %340 = vmatprep.subr.bf16.mxu0 0
      %341 = vmatpush1.bf16.msra.mxu0 0
      %342 = vmatprep.subr.bf16.mxu0 0
      %343 = vmatpush1.bf16.msra.mxu0 0
      %344 = vmatprep.subr.bf16.mxu0 0
      %345 = vmatpush1.bf16.msra.mxu0 0
      %346 = vmatprep.subr.bf16.mxu0 0
      %347 = vmatpush1.bf16.msra.mxu0 0
      %348 = vmatprep.subr.bf16.mxu0 0
      %349 = vmatpush1.bf16.msra.mxu0 0
      %350 = vmatprep.subr.bf16.mxu0 0
      %351 = vmatpush1.bf16.msra.mxu0 0
      %352 = vmatprep.mubr.bf16.mxu0 0
      %353 = vmatmul.mubr.bf16.gmra.mrb[0].mxu0 %v310
      %v354 = vpop.f32.mrb[0].mxu0
      %v355 = vadd.f32 0.0, %v354
      %v356 = vpop.f32.mrb[0].mxu0
      %v357 = vpop.f32.mrb[0].mxu0
      %v358 = vadd.f32 0.0, %v357
      %v359 = vpop.f32.mrb[0].mxu0
      %360 = vmatprep.mubr.bf16.mxu0 0
      %361 = vmatmul.mubr.bf16.gmra.mrb[0].mxu0 %v313
      %v362 = vpop.f32.mrb[0].mxu0
      %v363 = vadd.f32 0.0, %v362
      %v364 = vpop.f32.mrb[0].mxu0
      %v365 = vpop.f32.mrb[0].mxu0
      %v366 = vadd.f32 0.0, %v365
      %v367 = vpop.f32.mrb[0].mxu0
      %368 = vmatprep.mubr.bf16.mxu0 0
      %369 = vmatmul.mubr.bf16.gmra.mrb[0].mxu0 %v316
      %v370 = vpop.f32.mrb[0].mxu0
      %v371 = vadd.f32 0.0, %v370
      %v372 = vpop.f32.mrb[0].mxu0
      %v373 = vpop.f32.mrb[0].mxu0
      %v374 = vadd.f32 0.0, %v373
      %v375 = vpop.f32.mrb[0].mxu0
      %376 = vdwg.mxu0
      %s377 = smul.u32 %s18, 128
      %v378 = vlaneseq
      %v379 = vand.u32 %v378, 127
      %v380 = vstv %s377
      %v381 = vadd.s32 %v380, %v379
      %vm382 = vcmp.lt.s32.totalorder %v381, 16
      %v383 = vsel %vm382, 1, 0
      %v384 = vcvt.s32.f32 %v383
      %v385 = vmul.f32 %v355, %v384
      %v386 = vmul.f32 %v358, %v384
      %v387 = vmul.f32 %v363, %v384
      %v388 = vmul.f32 %v366, %v384
      %v389 = vmul.f32 %v371, %v384
      %v390 = vmul.f32 %v374, %v384
      %v391 = vlaneseq
      %v392 = vshrl.u32 %v391, 7
      %v393 = vadd.s32 %v392, 8
      %v394 = vadd.s32 %v392, 16
      %v395 = vadd.s32 %v392, 24
      %v396 = vadd.s32 %v392, 32
      %v397 = vadd.s32 %v392, 40
      %vm398 = vcmp.eq.s32.totalorder %v392, 40
      %vm399 = vcmp.eq.s32.totalorder %v393, 40
      %vm400 = vcmp.eq.s32.totalorder %v394, 40
      %vm401 = vcmp.eq.s32.totalorder %v395, 40
      %vm402 = vcmp.eq.s32.totalorder %v396, 40
      %vm403 = vcmp.eq.s32.totalorder %v397, 40
      %v404 = vsel %vm398, %v384, %v385
      %v405 = vsel %vm399, %v384, %v386
      %v406 = vsel %vm400, %v384, %v387
      %v407 = vsel %vm401, %v384, %v388
      %v408 = vsel %vm402, %v384, %v389
      %v409 = vsel %vm403, %v384, %v390
      %v410 = vld [vmem:[%s169] sm:$0xff]
      %v411 = vld [vmem:[%s169 + $0x8] sm:$0xff]
      %v412 = vld [vmem:[%s169 + $0x10] sm:$0xff]
      %v413 = vld [vmem:[%s169 + $0x18] sm:$0xff]
      %v414 = vld [vmem:[%s169 + $0x20] sm:$0xff]
      %v415 = vld [vmem:[%s169 + $0x28] sm:$0xff]
      %416 = vmatprep.subr.mxu0 0.0
      %417 = vmatpush1.xpose.msra.mxu0 %v404
      %418 = vmatprep.subr.mxu0 0.0
      %419 = vmatpush1.xpose.msra.mxu0 %v405
      %420 = vmatprep.subr.mxu0 0.0
      %421 = vmatpush1.xpose.msra.mxu0 %v406
      %422 = vmatprep.subr.mxu0 0.0
      %423 = vmatpush1.xpose.msra.mxu0 %v407
      %424 = vmatprep.subr.mxu0 0.0
      %425 = vmatpush1.xpose.msra.mxu0 %v408
      %426 = vmatprep.subr.mxu0 0.0
      %427 = vmatpush1.xpose.msra.mxu0 %v409
      %428 = vmatprep.subr.mxu0 0.0
      %429 = vmatpush1.xpose.msra.mxu0 0.0
      %430 = vmatprep.subr.mxu0 0.0
      %431 = vmatpush1.xpose.msra.mxu0 0.0
      %432 = vmatprep.subr.mxu0 0.0
      %433 = vmatpush1.xpose.msra.mxu0 0.0
      %434 = vmatprep.subr.mxu0 0.0
      %435 = vmatpush1.xpose.msra.mxu0 0.0
      %436 = vmatprep.subr.mxu0 0.0
      %437 = vmatpush1.xpose.msra.mxu0 0.0
      %438 = vmatprep.subr.mxu0 0.0
      %439 = vmatpush1.xpose.msra.mxu0 0.0
      %440 = vmatprep.subr.mxu0 0.0
      %441 = vmatpush1.xpose.msra.mxu0 0.0
      %442 = vmatprep.subr.mxu0 0.0
      %443 = vmatpush1.xpose.msra.mxu0 0.0
      %444 = vmatprep.subr.mxu0 0.0
      %445 = vmatpush1.xpose.msra.mxu0 0.0
      %446 = vmatprep.subr.mxu0 0.0
      %447 = vmatpush1.xpose.msra.mxu0 0.0
      %448 = vmatprep.subr.mxu0 0.0
      %449 = vmatpush1.xpose.msra.mxu0 0.0
      %450 = vmatprep.subr.mxu0 0.0
      %451 = vmatpush1.xpose.msra.mxu0 0.0
      %452 = vmatprep.subr.mxu0 0.0
      %453 = vmatpush1.xpose.msra.mxu0 0.0
      %454 = vmatprep.subr.mxu0 0.0
      %455 = vmatpush1.xpose.msra.mxu0 0.0
      %456 = vmatprep.subr.mxu0 0.0
      %457 = vmatpush1.xpose.msra.mxu0 0.0
      %458 = vmatprep.subr.mxu0 0.0
      %459 = vmatpush1.xpose.msra.mxu0 0.0
      %460 = vmatprep.subr.mxu0 0.0
      %461 = vmatpush1.xpose.msra.mxu0 0.0
      %462 = vmatprep.subr.mxu0 0.0
      %463 = vmatpush1.xpose.msra.mxu0 0.0
      %464 = vmatprep.subr.mxu0 0.0
      %465 = vmatpush1.xpose.msra.mxu0 0.0
      %466 = vmatprep.subr.mxu0 0.0
      %467 = vmatpush1.xpose.msra.mxu0 0.0
      %468 = vmatprep.subr.mxu0 0.0
      %469 = vmatpush1.xpose.msra.mxu0 0.0
      %470 = vmatprep.subr.mxu0 0.0
      %471 = vmatpush1.xpose.msra.mxu0 0.0
      %472 = vmatprep.subr.mxu0 0.0
      %473 = vmatpush1.xpose.msra.mxu0 0.0
      %474 = vmatprep.subr.mxu0 0.0
      %475 = vmatpush1.xpose.msra.mxu0 0.0
      %476 = vmatprep.subr.mxu0 0.0
      %477 = vmatpush1.xpose.msra.mxu0 0.0
      %478 = vmatprep.subr.mxu0 0.0
      %479 = vmatpush1.xpose.msra.mxu0 0.0
      %480 = vmatprep.mubr.f32.mxu0 0.0
      %481 = vmatmul.mubr.f32.gmra.mrb[0].mxu0 %v404
      %v482 = vpop.f32.mrb[0].mxu0
      %v483 = vadd.f32 0.0, %v482
      %v484 = vpop.f32.mrb[0].mxu0
      %485 = vmatprep.mubr.f32.mxu0 0.0
      %486 = vmatmul.mubr.f32.gmra.mrb[0].mxu0 %v405
      %v487 = vpop.f32.mrb[0].mxu0
      %v488 = vadd.f32 0.0, %v487
      %v489 = vpop.f32.mrb[0].mxu0
      %490 = vmatprep.mubr.f32.mxu0 0.0
      %491 = vmatmul.mubr.f32.gmra.mrb[0].mxu0 %v406
      %v492 = vpop.f32.mrb[0].mxu0
      %v493 = vadd.f32 0.0, %v492
      %v494 = vpop.f32.mrb[0].mxu0
      %495 = vmatprep.mubr.f32.mxu0 0.0
      %496 = vmatmul.mubr.f32.gmra.mrb[0].mxu0 %v407
      %v497 = vpop.f32.mrb[0].mxu0
      %v498 = vadd.f32 0.0, %v497
      %v499 = vpop.f32.mrb[0].mxu0
      %500 = vmatprep.mubr.f32.mxu0 0.0
      %501 = vmatmul.mubr.f32.gmra.mrb[0].mxu0 %v408
      %v502 = vpop.f32.mrb[0].mxu0
      %v503 = vadd.f32 0.0, %v502
      %v504 = vpop.f32.mrb[0].mxu0
      %505 = vmatprep.mubr.f32.mxu0 0.0
      %506 = vmatmul.mubr.f32.gmra.mrb[0].mxu0 %v409
      %v507 = vpop.f32.mrb[0].mxu0
      %v508 = vadd.f32 0.0, %v507
      %v509 = vpop.f32.mrb[0].mxu0
      %510 = vdwg.mxu0
      %v511 = vadd.f32 %v410, %v483
      %v512 = vadd.f32 %v411, %v488
      %v513 = vadd.f32 %v412, %v493
      %v514 = vadd.f32 %v413, %v498
      %v515 = vadd.f32 %v414, %v503
      %v516 = vadd.f32 %v415, %v508
      %vm517 = vcmask 392192
      %518 = vst.msk [vmem:[%s169] sm:$0xff] %vm517, %v511
      %519 = vst.msk [vmem:[%s169 + $0x8] sm:$0xff] %vm517, %v512
      %520 = vst.msk [vmem:[%s169 + $0x10] sm:$0xff] %vm517, %v513
      %521 = vst.msk [vmem:[%s169 + $0x18] sm:$0xff] %vm517, %v514
      %522 = vst.msk [vmem:[%s169 + $0x20] sm:$0xff] %vm517, %v515
      %523 = vst.msk [vmem:[%s169 + $0x28] sm:$0xff] %vm517, %v516
      %p524 = scmp.lt.s32.totalorder %s17, 1
      %s525 = scalar_select %p524, %s17, 1
      %s526 = smul.addr %s525, 6
      %s527 = smul.addr %s526, 8
      %s528 = scalar_lea.vmem %s2, %s527
      // Predicated region
      $region33: #{multi_aspp_block.2} parent=27 // pred_check
        %p529 = pneg %p92
      $region34: #{multi_aspp_block.2} parent=27 // pred_check_branch
        %531 = sbr.rel (%p529) target = $region36
      $region35: #{multi_aspp_block.2} parent=27 // pred_region
        _
      $region36: #{multi_aspp_block.2} parent=27 // pred_fallthru
        _
    $region28: #{multi_aspp_block.2} parent=5 // pred_fallthru
      _
    %p532 = scmp.le.s32.totalorder 2, %s8
    // Predicated region
    $region37: #{multi_aspp_block.2} parent=5 // pred_check
      %p533 = pneg %p532
    $region38: #{multi_aspp_block.2} parent=5 // pred_check_branch
      %535 = sbr.rel (%p533) target = $region40
    $region39: #{multi_aspp_block.2} parent=5 // pred_region
      %s536 = ssub.s32 %s8, 2
      // Predicated region
      $region41: #{multi_aspp_block.2} parent=39 // pred_check
        %p537 = pneg %p98
      $region42: #{multi_aspp_block.2} parent=39 // pred_check_branch
        %539 = sbr.rel (%p537) target = $region44
      $region43: #{multi_aspp_block.2} parent=39 // pred_region
        %p540 = scmp.lt.s32.totalorder %s19, 1
        %s541 = scalar_select %p540, %s19, 1
        %s542 = smul.addr %s541, 6
        %s543 = smul.addr %s542, 8
        %s544 = scalar_lea.vmem %s2, %s543
      $region44: #{multi_aspp_block.2} parent=39 // pred_fallthru
        _
    $region40: #{multi_aspp_block.2} parent=5 // pred_fallthru
      _
  $region6: #{multi_aspp_block.2} parent=0 // loop_footer
    %s12 = sadd.s32 1, %s8
  $region7: #{multi_aspp_block.2} parent=0 // loop_footer_branch
    %7 = sbr.rel target = $region3
  $region8: #{multi_aspp_block.2} parent=0 // loop_exit
    _

// kernel: multi_aspp_block.3
$region0: #{multi_aspp_block.3}
  #allocation0 [shape = 'u32[]', space=smem, size = 0x4, offset = 0x4, fixed_abs, tag = 'smem constant byte address 0x4 - core index']
  #allocation1 [shape = 'u32[144,128]{1,0:T(1,128)}', space=vmem, size = 0x12000, scoped, tag = 'internal scratch']
  #allocation2 [shape = 'f32[1]{0:T(128)S(6)}', space=smem, size = 0x200, scoped, tag = 'scoped memory for multi_aspp_block.3']
  %s0 = inlined_call_operand.vmem [shape: bf16[2,1,4,138], index: 0, kind: input, shape index: {}]
  %s1 = inlined_call_operand.vmem [shape: bf16[8,44], index: 1, kind: input, shape index: {}]
  %s2 = inlined_call_operand.vmem [shape: f32[8,1], index: 2, kind: input, shape index: {}]
  %s3 = inlined_call_operand.vmem [shape: f32[2,8,1], index: 3, kind: input, shape index: {}]
  %s4 = inlined_call_operand.<no memory space> [shape: f32[1], index: 4, kind: input, shape index: {}]
  %s5 = inlined_call_operand.hbm [shape: f32[2,8,128], index: 5, kind: output, shape index: {}]
  %s6 = sld [smem:[#allocation0]]
  $region53: #{multi_aspp_block.3} parent=0
    _
  %s8 = ssub.s32 1, %s6
  %s9 = scalar_select 0, %s8, %s6
  %10 = sst [smem:[#allocation2]] %s4
  $region1: #{multi_aspp_block.3} parent=0
    #allocation3 [shape = 'u8[8192]{0}', space=vmem, size = 0x2000, scoped, tag = 'output window, operand 0']
    #allocation4 [shape = 's32[2]{0}', space=sflag, size = 0x8, scoped, tag = 'scoped memory for multi_aspp_block.3']
    %11 = vsyncpa [#allocation4], 0
    %s12 = scalar_lea.sflag [#allocation4], 1
    %13 = vsyncpa %s12, 0
    loop: start=0, step=1, limit=4
    $region2: #{multi_aspp_block.3} parent=1 // loop_pre_header
      _
    $region3: #{multi_aspp_block.3} parent=1 // loop_header
      %s15 = sphi 0, %s19
      %p16 = scmp.ge.s32.totalorder %s15, 4
      %s22 = sphi 0, %s34
      %s23 = sphi 0, %s30
      %s24 = sphi 0, %s22
      %s25 = sphi 0, %s23
      %s26 = sphi 0, %s24
      %s27 = sphi 0, %s25
      %s39 = sphi 0, %s41
      %s42 = sphi 0, %s39
      %s43 = sphi 0, %s42
      %s59 = sphi 0, %s43
      %s63 = sphi 0, %s63
      %s65 = sphi 0, %s63
      %s66 = sphi 0, %s65
      %s80 = sphi 0, %s66
      %s84 = sphi 0, %s84
      %s86 = sphi 0, %s84
      %s87 = sphi 0, %s86
      %s101 = sphi 0, %s87
      %s107 = sphi 0, %s109
      %s110 = sphi 0, %s107
      %s111 = sphi 0, %s110
      %s127 = sphi 0, %s111
      %s131 = sphi 0, %s131
      %s133 = sphi 0, %s131
      %s134 = sphi 0, %s133
      %s148 = sphi 0, %s134
      %s156 = sphi 0, %s158
      %s159 = sphi 0, %s156
      %s160 = sphi 0, %s159
      %s176 = sphi 0, %s160
    $region4: #{multi_aspp_block.3} parent=1 // loop_header_branch
      %18 = sbr.rel (%p16) target = $region8
    $region5: #{multi_aspp_block.3} parent=1 // loop_body
      %s20 = ssub.s32 %s15, 1
      %s21 = ssub.s32 %s15, 2
      %s28 = sadd.s32 1, %s23
      %p29 = scmp.ge.s32.totalorder %s28, 1
      %s30 = scalar_select %p29, 0, %s28
      %s31 = sadd.s32 1, %s22
      %s32 = scalar_select %p29, %s31, %s22
      %p33 = scmp.ge.s32.totalorder %s32, 2
      %s34 = scalar_select %p33, 0, %s32
      %s35 = ssub.s32 %s22, %s34
      %s36 = ssub.s32 %s23, %s30
      %s37 = sor.u32 %s35, %s36
      %p38 = scmp.eq.s32.totalorder %s37, 0
      %s40 = sadd.s32 %s39, 1
      %s41 = scalar_select %p38, %s39, %s40
      %p44 = pneg %p38
      %p45 = scmp.eq.s32.totalorder %s15, 1
      %p46 = por %p44, %p45
      %p47 = scmp.ne.s32.totalorder %s39, %s42
      %p48 = scmp.eq.s32.totalorder %s15, 0
      %p49 = por %p47, %p48
      %p50 = scmp.ne.s32.totalorder %s39, %s42
      %p51 = scmp.eq.s32.totalorder %s20, 1
      %p52 = por %p50, %p51
      %p53 = scmp.ne.s32.totalorder %s42, %s43
      %p54 = scmp.eq.s32.totalorder %s20, 0
      %p55 = por %p53, %p54
      %p56 = scmp.ne.s32.totalorder %s42, %s43
      %p57 = scmp.eq.s32.totalorder %s21, 1
      %p58 = por %p56, %p57
      %p60 = scmp.ne.s32.totalorder %s43, %s59
      %p61 = scmp.eq.s32.totalorder %s21, 0
      %p62 = por %p60, %p61
      %s64 = sadd.s32 %s63, 1
      %p67 = scmp.eq.s32.totalorder %s15, 1
      %p68 = scmp.ne.s32.totalorder %s63, %s65
      %p69 = scmp.eq.s32.totalorder %s15, 0
      %p70 = por %p68, %p69
      %p71 = scmp.ne.s32.totalorder %s63, %s65
      %p72 = scmp.eq.s32.totalorder %s20, 1
      %p73 = por %p71, %p72
      %p74 = scmp.ne.s32.totalorder %s65, %s66
      %p75 = scmp.eq.s32.totalorder %s20, 0
      %p76 = por %p74, %p75
      %p77 = scmp.ne.s32.totalorder %s65, %s66
      %p78 = scmp.eq.s32.totalorder %s21, 1
      %p79 = por %p77, %p78
      %p81 = scmp.ne.s32.totalorder %s66, %s80
      %p82 = scmp.eq.s32.totalorder %s21, 0
      %p83 = por %p81, %p82
      %s85 = sadd.s32 %s84, 1
      %p88 = scmp.eq.s32.totalorder %s15, 1
      %p89 = scmp.ne.s32.totalorder %s84, %s86
      %p90 = scmp.eq.s32.totalorder %s15, 0
      %p91 = por %p89, %p90
      %p92 = scmp.ne.s32.totalorder %s84, %s86
      %p93 = scmp.eq.s32.totalorder %s20, 1
      %p94 = por %p92, %p93
      %p95 = scmp.ne.s32.totalorder %s86, %s87
      %p96 = scmp.eq.s32.totalorder %s20, 0
      %p97 = por %p95, %p96
      %p98 = scmp.ne.s32.totalorder %s86, %s87
      %p99 = scmp.eq.s32.totalorder %s21, 1
      %p100 = por %p98, %p99
      %p102 = scmp.ne.s32.totalorder %s87, %s101
      %p103 = scmp.eq.s32.totalorder %s21, 0
      %p104 = por %p102, %p103
      %s105 = ssub.s32 %s22, %s34
      %p106 = scmp.eq.s32.totalorder %s105, 0
      %s108 = sadd.s32 %s107, 1
      %s109 = scalar_select %p106, %s107, %s108
      %p112 = pneg %p106
      %p113 = scmp.eq.s32.totalorder %s15, 1
      %p114 = por %p112, %p113
      %p115 = scmp.ne.s32.totalorder %s107, %s110
      %p116 = scmp.eq.s32.totalorder %s15, 0
      %p117 = por %p115, %p116
      %p118 = scmp.ne.s32.totalorder %s107, %s110
      %p119 = scmp.eq.s32.totalorder %s20, 1
      %p120 = por %p118, %p119
      %p121 = scmp.ne.s32.totalorder %s110, %s111
      %p122 = scmp.eq.s32.totalorder %s20, 0
      %p123 = por %p121, %p122
      %p124 = scmp.ne.s32.totalorder %s110, %s111
      %p125 = scmp.eq.s32.totalorder %s21, 1
      %p126 = por %p124, %p125
      %p128 = scmp.ne.s32.totalorder %s111, %s127
      %p129 = scmp.eq.s32.totalorder %s21, 0
      %p130 = por %p128, %p129
      %s132 = sadd.s32 %s131, 1
      %p135 = scmp.eq.s32.totalorder %s15, 1
      %p136 = scmp.ne.s32.totalorder %s131, %s133
      %p137 = scmp.eq.s32.totalorder %s15, 0
      %p138 = por %p136, %p137
      %p139 = scmp.ne.s32.totalorder %s131, %s133
      %p140 = scmp.eq.s32.totalorder %s20, 1
      %p141 = por %p139, %p140
      %p142 = scmp.ne.s32.totalorder %s133, %s134
      %p143 = scmp.eq.s32.totalorder %s20, 0
      %p144 = por %p142, %p143
      %p145 = scmp.ne.s32.totalorder %s133, %s134
      %p146 = scmp.eq.s32.totalorder %s21, 1
      %p147 = por %p145, %p146
      %p149 = scmp.ne.s32.totalorder %s134, %s148
      %p150 = scmp.eq.s32.totalorder %s21, 0
      %p151 = por %p149, %p150
      %s152 = ssub.s32 %s22, %s34
      %s153 = ssub.s32 %s23, %s30
      %s154 = sor.u32 %s152, %s153
      %p155 = scmp.eq.s32.totalorder %s154, 0
      %s157 = sadd.s32 %s156, 1
      %s158 = scalar_select %p155, %s156, %s157
      %p161 = pneg %p155
      %p162 = scmp.eq.s32.totalorder %s15, 1
      %p163 = por %p161, %p162
      %p164 = scmp.ne.s32.totalorder %s156, %s159
      %p165 = scmp.eq.s32.totalorder %s15, 0
      %p166 = por %p164, %p165
      %p167 = scmp.ne.s32.totalorder %s156, %s159
      %p168 = scmp.eq.s32.totalorder %s20, 1
      %p169 = por %p167, %p168
      %p170 = scmp.ne.s32.totalorder %s159, %s160
      %p171 = scmp.eq.s32.totalorder %s20, 0
      %p172 = por %p170, %p171
      %p173 = scmp.ne.s32.totalorder %s159, %s160
      %p174 = scmp.eq.s32.totalorder %s21, 1
      %p175 = por %p173, %p174
      %p177 = scmp.ne.s32.totalorder %s160, %s176
      %p178 = scmp.eq.s32.totalorder %s21, 0
      %p179 = por %p177, %p178
      %p180 = scmp.le.s32.totalorder 1, %s15
      %p181 = scmp.lt.s32.totalorder %s15, 3
      %p182 = pnand %p180, %p181
      %p183 = pneg %p182
      // Predicated region
      $region9: #{multi_aspp_block.3} parent=5 // pred_check
        _
      $region10: #{multi_aspp_block.3} parent=5 // pred_check_branch
        %185 = sbr.rel (%p182) target = $region12
      $region11: #{multi_aspp_block.3} parent=5 // pred_region
        %s186 = ssub.s32 %s15, 1
        // Predicated region
        $region13: #{multi_aspp_block.3} parent=11 // pred_check
          %p187 = pneg %p76
        $region14: #{multi_aspp_block.3} parent=11 // pred_check_branch
          %189 = sbr.rel (%p187) target = $region16
        $region15: #{multi_aspp_block.3} parent=11 // pred_region
          _
        $region16: #{multi_aspp_block.3} parent=11 // pred_fallthru
          _
        // Predicated region
        $region17: #{multi_aspp_block.3} parent=11 // pred_check
          %p190 = pneg %p97
        $region18: #{multi_aspp_block.3} parent=11 // pred_check_branch
          %192 = sbr.rel (%p190) target = $region20
        $region19: #{multi_aspp_block.3} parent=11 // pred_region
          _
        $region20: #{multi_aspp_block.3} parent=11 // pred_fallthru
          _
        // Predicated region
        $region21: #{multi_aspp_block.3} parent=11 // pred_check
          %p193 = pneg %p144
        $region22: #{multi_aspp_block.3} parent=11 // pred_check_branch
          %195 = sbr.rel (%p193) target = $region24
        $region23: #{multi_aspp_block.3} parent=11 // pred_region
          _
        $region24: #{multi_aspp_block.3} parent=11 // pred_fallthru
          _
      $region12: #{multi_aspp_block.3} parent=5 // pred_fallthru
        _
      %p196 = scmp.lt.s32.totalorder %s15, 2
      // Predicated region
      $region25: #{multi_aspp_block.3} parent=5 // pred_check
        %p197 = pneg %p196
      $region26: #{multi_aspp_block.3} parent=5 // pred_check_branch
        %199 = sbr.rel (%p197) target = $region28
      $region27: #{multi_aspp_block.3} parent=5 // pred_region
        // Predicated region
        $region29: #{multi_aspp_block.3} parent=27 // pred_check
          %p200 = pneg %p49
        $region30: #{multi_aspp_block.3} parent=27 // pred_check_branch
          %202 = sbr.rel (%p200) target = $region32
        $region31: #{multi_aspp_block.3} parent=27 // pred_region
          %p203 = scmp.lt.s32.totalorder %s22, 1
          %s204 = scalar_select %p203, %s22, 1
          %p205 = scmp.lt.s32.totalorder %s23, 0
          %s206 = scalar_select %p205, %s23, 0
          %s207 = smul.addr %s206, 2
          %s208 = smul.addr %s204, 2
          %s209 = sadd.s32 %s207, %s208
          %s210 = smul.addr %s209, 2
          %s211 = scalar_lea.vmem %s0, %s210
        $region32: #{multi_aspp_block.3} parent=27 // pred_fallthru
          _
        // Predicated region
        $region33: #{multi_aspp_block.3} parent=27 // pred_check
          %p212 = pneg %p117
        $region34: #{multi_aspp_block.3} parent=27 // pred_check_branch
          %214 = sbr.rel (%p212) target = $region36
        $region35: #{multi_aspp_block.3} parent=27 // pred_region
          %p215 = scmp.lt.s32.totalorder %s22, 1
          %s216 = scalar_select %p215, %s22, 1
          %s217 = smul.addr %s216, 8
          %s218 = scalar_lea.vmem %s3, %s217
        $region36: #{multi_aspp_block.3} parent=27 // pred_fallthru
          _
      $region28: #{multi_aspp_block.3} parent=5 // pred_fallthru
        _
      %p219 = scmp.le.s32.totalorder 1, %s15
      %p220 = scmp.lt.s32.totalorder %s15, 3
      %p221 = pnand %p219, %p220
      %p222 = pneg %p221
      // Predicated region
      $region37: #{multi_aspp_block.3} parent=5 // pred_check
        _
      $region38: #{multi_aspp_block.3} parent=5 // pred_check_branch
        %224 = sbr.rel (%p221) target = $region40
      $region39: #{multi_aspp_block.3} parent=5 // pred_region
        %s225 = ssub.s32 %s15, 1
        %p226 = scmp.lt.s32.totalorder %s24, 1
        %s227 = scalar_select %p226, %s24, 1
        %p228 = scmp.lt.s32.totalorder %s25, 0
        %s229 = scalar_select %p228, %s25, 0
        %s230 = smul.addr %s229, 2
        %s231 = smul.addr %s227, 2
        %s232 = sadd.s32 %s230, %s231
        %s233 = smul.addr %s232, 2
        %s234 = scalar_lea.vmem %s0, %s233
        %p235 = pneg %p55
        %p236 = pneg %p52
        %p237 = pneg %p76
        %p238 = pneg %p73
        %p239 = pneg %p97
        %p240 = pneg %p94
        %p241 = scmp.lt.s32.totalorder %s24, 1
        %s242 = scalar_select %p241, %s24, 1
        %s243 = smul.addr %s242, 8
        %s244 = scalar_lea.vmem %s3, %s243
        %p245 = pneg %p123
        %p246 = pneg %p120
        %p247 = pneg %p144
        %p248 = pneg %p141
        %p249 = pneg %p172
        %p250 = pneg %p169
        %s251 = sand.u32 %s159, 1
        %s252 = scalar_lea.sflag [#allocation4], %s251
        %s253 = sand.u32 %s159, 1
        %s254 = smul.addr %s253, 8
        %s255 = scalar_lea.vmem [#allocation3], %s254
        %p256 = scmp.lt.s32.totalorder %s24, 1
        %s257 = scalar_select %p256, %s24, 1
        %p258 = scmp.lt.s32.totalorder %s25, 0
        %s259 = scalar_select %p258, %s25, 0
        %s260 = smul.addr %s259, 2
        %s261 = smul.addr %s257, 2
        %s262 = sadd.s32 %s260, %s261
        %s263 = smul.addr %s262, 2
        %s264 = scalar_lea.vmem %s0, %s263
        %p265 = scmp.lt.s32.totalorder %s24, 1
        %s266 = scalar_select %p265, %s24, 1
        %s267 = smul.addr %s266, 8
        %s268 = scalar_lea.vmem %s3, %s267
        %v270 = vld [vmem:[%s264] sm:$0xf]
        %v272 = vcombine.low %v270, %v270
        %v274 = vunpack.c.l.s4 1983009808
        %v275 = vunpack.c.0.s8 %v274
        %v276 = vlaneseq
        %v277 = vshrl.u32 %v276, 7
        %v278 = vsub.s32 %v275, %v277
        %v279 = vrot.slane %v272, %v278
        %v281 = vunpack.c.l.s4 1983009808
        %v282 = vunpack.c.0.s8 %v281
        %v283 = vlaneseq
        %v284 = vshrl.u32 %v283, 7
        %v285 = vsub.s32 %v282, %v284
        %v286 = vrot.slane %v270, %v285
        %v287 = vcombine.high %v279, %v279
        %288 = vrot.lane.b32.xlu0 %v279, 127
        %v289 = vpop.permute.xlu0 %288
        %290 = vrot.lane.b32.xlu0 %v287, 127
        %v291 = vpop.permute.xlu0 %290
        %vm292 = vcmask 1039360
        %v293 = vsel %vm292, %v289, %v291
        %v294 = vcombine.low %v286, %v286
        %295 = vrot.lane.b32.xlu0 %v294, 126
        %v296 = vpop.permute.xlu0 %295
        %297 = vrot.lane.b32.xlu0 %v286, 126
        %v298 = vpop.permute.xlu0 %297
        %vm299 = vcmask 1031168
        %v300 = vsel %vm299, %v296, %v298
        %v301 = vcombine.low %v279, %v279
        %302 = vrot.lane.b32.xlu0 %v301, 125
        %v303 = vpop.permute.xlu0 %302
        %304 = vrot.lane.b32.xlu0 %v279, 125
        %v305 = vpop.permute.xlu0 %304
        %vm306 = vcmask 1022976
        %v307 = vsel %vm306, %v303, %v305
        %v308 = vcombine.high %v286, %v286
        %309 = vrot.lane.b32.xlu0 %v286, 124
        %v310 = vpop.permute.xlu0 %309
        %311 = vrot.lane.b32.xlu0 %v308, 124
        %v312 = vpop.permute.xlu0 %311
        %vm313 = vcmask 1014784
        %v314 = vsel %vm313, %v310, %v312
        %315 = vrot.lane.b32.xlu0 %v279, 123
        %v316 = vpop.permute.xlu0 %315
        %317 = vrot.lane.b32.xlu0 %v287, 123
        %v318 = vpop.permute.xlu0 %317
        %vm319 = vcmask 1006592
        %v320 = vsel %vm319, %v316, %v318
        %321 = vrot.lane.b32.xlu0 %v294, 122
        %v322 = vpop.permute.xlu0 %321
        %323 = vrot.lane.b32.xlu0 %v286, 122
        %v324 = vpop.permute.xlu0 %323
        %vm325 = vcmask 998400
        %v326 = vsel %vm325, %v322, %v324
        %327 = vrot.lane.b32.xlu0 %v301, 121
        %v328 = vpop.permute.xlu0 %327
        %329 = vrot.lane.b32.xlu0 %v279, 121
        %v330 = vpop.permute.xlu0 %329
        %vm331 = vcmask 990208
        %v332 = vsel %vm331, %v328, %v330
        %333 = vrot.lane.b32.xlu0 %v286, 120
        %v334 = vpop.permute.xlu0 %333
        %335 = vrot.lane.b32.xlu0 %v308, 120
        %v336 = vpop.permute.xlu0 %335
        %vm337 = vcmask 982016
        %v338 = vsel %vm337, %v334, %v336
        %339 = vrot.lane.b32.xlu0 %v279, 119
        %v340 = vpop.permute.xlu0 %339
        %341 = vrot.lane.b32.xlu0 %v287, 119
        %v342 = vpop.permute.xlu0 %341
        %vm343 = vcmask 973824
        %v344 = vsel %vm343, %v340, %v342
        %345 = vrot.lane.b32.xlu0 %v294, 118
        %v346 = vpop.permute.xlu0 %345
        %347 = vrot.lane.b32.xlu0 %v286, 118
        %v348 = vpop.permute.xlu0 %347
        %vm349 = vcmask 965632
        %v350 = vsel %vm349, %v346, %v348
        %vm351 = vcmask 1041408
        %v354 = vsel %vm351, %v270, %v293
        %vm355 = vcmask 1043456
        %v357 = vsel %vm355, %v354, %v300
        %vm358 = vcmask 1045504
        %v360 = vsel %vm358, %v357, %v307
        %v364 = vsel %vm351, %v314, %v320
        %v366 = vsel %vm355, %v364, %v326
        %v368 = vsel %vm358, %v366, %v332
        %v372 = vsel %vm351, %v338, %v344
        %v374 = vsel %vm355, %v372, %v350
        %v375 = vld [vmem:[%s1] sm:$0xf]
        %v376 = vld [vmem:[%s2] sm:$0xff]
        %378 = vset.pattern.permute.xlu0 0
        %379 = vperm.xlu0 %378, %v376
        %v380 = vpop.permute.xlu0 %379
        %vm382 = vcmask 359424
        %v384 = vsel %vm382, %v375, 0
        %v386 = vsel %vm358, %v374, 0
        %388 = vmatprep.subr.bf16.mxu0 0
        %389 = vmatpush1.bf16.msra.mxu0 %v360
        %390 = vmatprep.subr.bf16.mxu0 0
        %391 = vmatpush1.bf16.msra.mxu0 %v368
        %392 = vmatprep.subr.bf16.mxu0 0
        %393 = vmatpush1.bf16.msra.mxu0 %v386
        %394 = vmatprep.subr.bf16.mxu0 0
        %395 = vmatpush1.bf16.msra.mxu0 0
        %396 = vmatprep.subr.bf16.mxu0 0
        %397 = vmatpush1.bf16.msra.mxu0 0
        %398 = vmatprep.subr.bf16.mxu0 0
        %399 = vmatpush1.bf16.msra.mxu0 0
        %400 = vmatprep.subr.bf16.mxu0 0
        %401 = vmatpush1.bf16.msra.mxu0 0
        %402 = vmatprep.subr.bf16.mxu0 0
        %403 = vmatpush1.bf16.msra.mxu0 0
        %404 = vmatprep.subr.bf16.mxu0 0
        %405 = vmatpush1.bf16.msra.mxu0 0
        %406 = vmatprep.subr.bf16.mxu0 0
        %407 = vmatpush1.bf16.msra.mxu0 0
        %408 = vmatprep.subr.bf16.mxu0 0
        %409 = vmatpush1.bf16.msra.mxu0 0
        %410 = vmatprep.subr.bf16.mxu0 0
        %411 = vmatpush1.bf16.msra.mxu0 0
        %412 = vmatprep.subr.bf16.mxu0 0
        %413 = vmatpush1.bf16.msra.mxu0 0
        %414 = vmatprep.subr.bf16.mxu0 0
        %415 = vmatpush1.bf16.msra.mxu0 0
        %416 = vmatprep.subr.bf16.mxu0 0
        %417 = vmatpush1.bf16.msra.mxu0 0
        %418 = vmatprep.subr.bf16.mxu0 0
        %419 = vmatpush1.bf16.msra.mxu0 0
        %420 = vmatprep.mubr.bf16.mxu0 0
        %421 = vmatmul.mubr.bf16.gmra.mrb[0].mxu0 %v384
        %v422 = vpop.f32.mrb[0].mxu0
        %v423 = vadd.f32 %v380, %v422
        %v424 = vpop.f32.mrb[0].mxu0
        %v425 = vpop.f32.mrb[0].mxu0
        %v426 = vpop.f32.mrb[0].mxu0
        %427 = vdwg.mxu0
        %v428 = vld [vmem:[%s268] sm:$0xff]
        %430 = vset.pattern.permute.xlu0 0
        %431 = vperm.xlu0 %430, %v428
        %v432 = vpop.permute.xlu0 %431
        %v434 = vmul.f32 %v423, %v432
        %s435 = sld [smem:[#allocation2]]
        %vm436 = vcmp.ge.f32.partialorder %v434, 0.0
        %v437 = vstv %s435
        %v438 = vmul.f32 %v437, %v434
        %v439 = vsel %vm436, %v434, %v438
        %440 = vst [vmem:[%s255] sm:$0xff] %v439
        %s441 = sand.u32 %s159, 1
        %s442 = scalar_lea.sflag [#allocation4], %s441
        %s443 = sand.u32 %s159, 1
        %s444 = smul.addr %s443, 8
        %s445 = scalar_lea.vmem [#allocation3], %s444
        // Predicated region
        $region41: #{multi_aspp_block.3} parent=39 // pred_check
          %p446 = pneg %p169
        $region42: #{multi_aspp_block.3} parent=39 // pred_check_branch
          %448 = sbr.rel (%p446) target = $region44
        $region43: #{multi_aspp_block.3} parent=39 // pred_region
          %s450 = ssub.s32 128, 128
          %451 = vsyncadd %s442, %s450
          %s452 = sadd.s32 %s25, %s24
          %s453 = smul.addr %s452, 128
          %s454 = scalar_lea.hbm %s5, %s453
          %s456 = sshll.u32 %s445, 4
          %s457 = int_to_ptr.vmem [resolvable:$true] %s456
          %459 = dma.vmem_to_hbm [thread:$0]  %s457, 128, %s454, %s442
        $region44: #{multi_aspp_block.3} parent=39 // pred_fallthru
          _
      $region40: #{multi_aspp_block.3} parent=5 // pred_fallthru
        _
      %p460 = scmp.le.s32.totalorder 2, %s15
      // Predicated region
      $region45: #{multi_aspp_block.3} parent=5 // pred_check
        %p461 = pneg %p460
      $region46: #{multi_aspp_block.3} parent=5 // pred_check_branch
        %463 = sbr.rel (%p461) target = $region48
      $region47: #{multi_aspp_block.3} parent=5 // pred_region
        %s464 = ssub.s32 %s15, 2
        // Predicated region
        $region49: #{multi_aspp_block.3} parent=47 // pred_check
          %p465 = pneg %p175
        $region50: #{multi_aspp_block.3} parent=47 // pred_check_branch
          %467 = sbr.rel (%p465) target = $region52
        $region51: #{multi_aspp_block.3} parent=47 // pred_region
          %s468 = sand.u32 %s160, 1
          %s469 = scalar_lea.sflag [#allocation4], %s468
          %s470 = sand.u32 %s160, 1
          %s471 = smul.addr %s470, 8
          %s472 = scalar_lea.vmem [#allocation3], %s471
          %473 = dma.done %s469, 128
        $region52: #{multi_aspp_block.3} parent=47 // pred_fallthru
          _
      $region48: #{multi_aspp_block.3} parent=5 // pred_fallthru
        _
    $region6: #{multi_aspp_block.3} parent=1 // loop_footer
      %s19 = sadd.s32 1, %s15
    $region7: #{multi_aspp_block.3} parent=1 // loop_footer_branch
      %14 = sbr.rel target = $region3
    $region8: #{multi_aspp_block.3} parent=1 // loop_exit
      _
    %474 = vsyncpa [#allocation4], 1
    %s475 = scalar_lea.sflag [#allocation4], 1
    %476 = vsyncpa %s475, 1

</llo_original>
